<compile_context>
chip_gen: v7x
topology: tpu7x:2x2x1
jax: 0.10.0
libtpu: 0.0.40
codegen_flags: <defaults>
</compile_context>

<pallas_src>
import functools
import math

import jax
import jax.numpy as jnp
from jax import lax
from jax.experimental import pallas as pl
from jax.experimental.pallas import tpu as pltpu

_EPS = 1e-5
_SEG = 128  # segment axis of S / S^T padded to one full lane width (g <= 128)


def _cdiv(a, b):
    return -(-a // b)


def _round_up(a, b):
    return _cdiv(a, b) * b


# --------------------------------------------------------------------------- #
# In-kernel helpers
# --------------------------------------------------------------------------- #
def _split_hi_lo(v):
    """f32 -> (hi, lo) bf16 pair with hi + lo ~= v (rel. err ~2^-17)."""
    hi = v.astype(jnp.bfloat16)
    lo = (v - hi.astype(jnp.float32)).astype(jnp.bfloat16)
    return hi, lo


def _exact_dot(v_f32, m_bf16):
    """f32-accurate dot against an exactly-bf16-representable 0/1 matrix.

    Two single-pass bf16 MXU dots (hi/lo split of the f32 operand) instead of
    the 6-pass HIGHEST decomposition -> 3x less MXU work, same accuracy class.
    """
    hi, lo = _split_hi_lo(v_f32)
    return (jnp.dot(hi, m_bf16, preferred_element_type=jnp.float32)
            + jnp.dot(lo, m_bf16, preferred_element_type=jnp.float32))


# --------------------------------------------------------------------------- #
# Kernels
# --------------------------------------------------------------------------- #
def _ln_kernel_rowdense(x_ref, w_ref, o_ref, *, inv_c):
    # x_ref: (TILE, C), C a multiple of 128 -> one logical row per lane-row.
    # TODO(synk): on v7x the two cross-lane jnp.sum reductions per vreg may
    # bind the XLU slot; if profiling shows that, route them through the MXU
    # like the folded path (g=1 segment matrix).
    x = x_ref[...].astype(jnp.float32)
    mean = jnp.sum(x, axis=-1, keepdims=True) * inv_c
    mean_sq = jnp.sum(x * x, axis=-1, keepdims=True) * inv_c
    var = jnp.maximum(mean_sq - mean * mean, 0.0)       # unbiased=False
    inv = lax.rsqrt(var + _EPS)
    o_ref[...] = (x * inv * w_ref[...]).astype(o_ref.dtype)


def _ln_kernel_folded_f32(x_ref, w_ref, s_ref, st_ref, o_ref, *, inv_c):
    # x_ref: (TILE, L), L = g*C (multiple of 128); each lane-row holds g rows.
    # s_ref: (L, 128) bf16 one-hot segment matrix (exact), st_ref: (128, L).
    x = x_ref[...].astype(jnp.float32)
    S = s_ref[...]
    sum_x = _exact_dot(x, S)                             # (TILE, 128)
    sum_x2 = _exact_dot(x * x, S)
    mean = sum_x * inv_c
    var = jnp.maximum(sum_x2 * inv_c - mean * mean, 0.0)
    inv = lax.rsqrt(var + _EPS)                          # cols >= g are junk
    # Broadcast per-segment inv back to its C lanes (junk cols hit zero rows
    # of S^T).  Weight kept as a separate f32 resident so every MXU operand
    # that needs exactness stays an exact 0/1 bf16 matrix.
    inv_full = _exact_dot(inv, st_ref[...])              # (TILE, L)
    o_ref[...] = (x * inv_full * w_ref[...]).astype(o_ref.dtype)


def _ln_kernel_folded_bf16(x_ref, s_ref, stw_ref, o_ref, *, inv_c):
    # bf16 fast path: single-pass bf16 MXU dots with f32 accumulation; x is
    # never upcast on the streaming path; weight is fused into S^T (STw).
    x = x_ref[...]                                       # (TILE, L) bf16
    S = s_ref[...]                                       # (L, 128) bf16 one-hot
    sum_x = jnp.dot(x, S, preferred_element_type=jnp.float32)
    sum_x2 = jnp.dot(x * x, S, preferred_element_type=jnp.float32)
    mean = sum_x * inv_c
    var = jnp.maximum(sum_x2 * inv_c - mean * mean, 0.0)
    inv = lax.rsqrt(var + _EPS).astype(jnp.bfloat16)     # (TILE, 128)
    # scale[t, j] = inv[t, seg(j)] * w[j % C]  (exactly one nonzero term)
    scale = jnp.dot(inv, stw_ref[...],
                    preferred_element_type=jnp.float32).astype(jnp.bfloat16)
    o_ref[...] = x * scale


# --------------------------------------------------------------------------- #
# Wrapper
# --------------------------------------------------------------------------- #
def biasfree_layernorm(x, weight, *,
                       target_block_bytes=4 * 1024 * 1024,
                       vmem_limit_bytes=48 * 1024 * 1024):
    """x: (..., C), weight: (C,). Returns same shape/dtype as x."""
    orig_shape = x.shape
    C = orig_shape[-1]
    rows = math.prod(orig_shape[:-1]) if len(orig_shape) > 1 else 1
    itemsize = jnp.dtype(x.dtype).itemsize
    sub = 8 if itemsize >= 4 else 16         # sublane granularity (f32:8, bf16:16)
    fast_bf16 = (x.dtype == jnp.bfloat16)

    # Lane folding factor: smallest g with (g*C) % 128 == 0.
    g = 1 if C % 128 == 0 else 128 // math.gcd(C, 128)
    L = g * C

    # Row-groups after folding.  Host-side padding ONLY when rows is not a
    # multiple of g (or the input is tiny) -- it costs one extra HBM pass.
    R = _cdiv(rows, g)
    if R * g != rows or R < sub:
        R = _round_up(max(R, sub), sub)
    rows_pad = R * g

    x2 = x.reshape(rows, C)
    if rows_pad != rows:
        # Zero rows normalize to zero (var=0 -> finite rsqrt, 0*scale = 0).
        x2 = jnp.pad(x2, ((0, rows_pad - rows), (0, 0)))
    x3 = x2.reshape(R, L)                    # free, row-major reshape

    # Big bandwidth-friendly tile, but clamped so the grid has ~>=4 steps
    # (lets v7x shard the "parallel" axis across its 2 TensorCores).  The
    # ragged remainder is handled by a partial last block (masked writes),
    # NOT by padding R up to a tile multiple.
    tile = max(sub, (target_block_bytes // (L * itemsize)) // sub * sub)
    tile = min(tile, _round_up(_cdiv(R, 4), sub))
    tile = min(tile, _round_up(R, sub))
    grid = (pl.cdiv(R, tile),)

    x_spec = pl.BlockSpec((tile, L), lambda i: (i, 0))
    out_spec = pl.BlockSpec((tile, L), lambda i: (i, 0))
    const_row = pl.BlockSpec((1, L), lambda i: (0, 0))          # VMEM-resident

    if g == 1:
        kernel = functools.partial(_ln_kernel_rowdense, inv_c=1.0 / C)
        args = [x3, weight.astype(jnp.float32).reshape(1, C)]
        in_specs = [x_spec, const_row]
    else:
        seg = jnp.arange(L, dtype=jnp.int32) // C               # segment id per lane
        onehot = seg[:, None] == jnp.arange(_SEG, dtype=jnp.int32)[None, :]
        S = onehot.astype(jnp.bfloat16)                         # (L, 128), exact 0/1
        w_l = jnp.tile(weight.astype(jnp.float32), g)           # (L,)
        s_spec = pl.BlockSpec((L, _SEG), lambda i: (0, 0))      # VMEM-resident
        st_spec = pl.BlockSpec((_SEG, L), lambda i: (0, 0))     # VMEM-resident
        if fast_bf16:
            # Fuse the weight into the broadcast matrix (removes one input,
            # its DMA, and a full-size VPU multiply).
            STw = (onehot.T.astype(jnp.float32) * w_l[None, :]).astype(jnp.bfloat16)
            kernel = functools.partial(_ln_kernel_folded_bf16, inv_c=1.0 / C)
            args = [x3, S, STw]
            in_specs = [x_spec, s_spec, st_spec]
        else:
            ST = onehot.T.astype(jnp.bfloat16)                  # (128, L)
            kernel = functools.partial(_ln_kernel_folded_f32, inv_c=1.0 / C)
            args = [x3, w_l.reshape(1, L), S, ST]
            in_specs = [x_spec, const_row, s_spec, st_spec]

    out = pl.pallas_call(
        kernel,
        out_shape=jax.ShapeDtypeStruct((R, L), x.dtype),
        grid_spec=pltpu.PrefetchScalarGridSpec(
            num_scalar_prefetch=0,
            grid=grid,
            in_specs=in_specs,
            out_specs=out_spec,
        ),
        compiler_params=pltpu.CompilerParams(
            dimension_semantics=("parallel",),
            vmem_limit_bytes=vmem_limit_bytes,
        ),
    )(*args)

    out = out.reshape(rows_pad, C)
    if rows_pad != rows:
        out = out[:rows]
    return out.reshape(orig_shape)


# --------------------------------------------------------------------------- #
# Reference + self-test
# --------------------------------------------------------------------------- #
def biasfree_layernorm_ref(x, weight):
    xf = x.astype(jnp.float32)
    mu = jnp.mean(xf, axis=-1, keepdims=True)
    var = jnp.mean((xf - mu) ** 2, axis=-1, keepdims=True)
    return (xf / jnp.sqrt(var + _EPS) * weight.astype(jnp.float32)).astype(x.dtype)


if __name__ == "__main__":
    key = jax.random.PRNGKey(0)
    # (shape, dtype, atol, rtol) -- exercises the folded f32 path, the ragged
    # (partial last block) path, the row-dense C%128==0 path, the bf16 fast
    # path with fused weight, and the rare rows%g!=0 pad fallback.
    cases = [
        ((2, 64, 32), jnp.float32, 1e-4, 1e-4),
        ((2, 50, 32), jnp.float32, 1e-4, 1e-4),     # ragged R -> partial block
        ((2, 16, 128), jnp.float32, 1e-4, 1e-4),    # C multiple of 128
        ((2, 64, 48), jnp.bfloat16, 3e-2, 2e-2),    # bf16 I/O, g=8 folding
        ((2, 50, 48), jnp.bfloat16, 3e-2, 2e-2),    # bf16 + rows % g != 0
    ]
    for shape, dtype, atol, rtol in cases:
        key, kx, kw = jax.random.split(key, 3)
        x = jax.random.normal(kx, shape, dtype=dtype)
        # Module init is torch.ones(C); use a non-trivial deterministic weight
        # so the scale path is actually validated.
        weight = jax.random.uniform(kw, (shape[-1],), dtype=dtype,
                                    minval=0.5, maxval=1.5)

        out = jax.block_until_ready(biasfree_layernorm(x, weight))
        ref = biasfree_layernorm_ref(x, weight)

        assert out.shape == x.shape and out.dtype == x.dtype
        ok = jnp.allclose(out.astype(jnp.float32), ref.astype(jnp.float32),
                          atol=atol, rtol=rtol)
        assert bool(ok), f"mismatch vs reference for shape={shape} dtype={dtype}"

    print("KERNEL_OK")
</pallas_src>

<mosaic_0001>
module attributes {stable_mosaic.version = 11 : i64} {
  func.func @_ln_kernel_folded_f32(%arg0: i32, %arg1: memref<8x128xf32, #tpu.memory_space<vmem>>, %arg2: memref<1x128xf32, #tpu.memory_space<vmem>>, %arg3: memref<128x128xbf16, #tpu.memory_space<vmem>>, %arg4: memref<128x128xbf16, #tpu.memory_space<vmem>>, %arg5: memref<8x128xf32, #tpu.memory_space<vmem>>) attributes {dimension_semantics = [#tpu.dimension_semantics<parallel>], iteration_bounds = array<i64: 4>, scalar_prefetch = 0 : i64, scratch_operands = 0 : i64, tpu.core_type = #tpu.core_type<tc>, window_params = [{transform_indices = @transform_0, window_bounds = array<i64: 8, 128>}, {pipeline_mode = #tpu.pipeline_mode<synchronous>, transform_indices = @transform_1, window_bounds = array<i64: 1, 128>}, {pipeline_mode = #tpu.pipeline_mode<synchronous>, transform_indices = @transform_2, window_bounds = array<i64: 128, 128>}, {pipeline_mode = #tpu.pipeline_mode<synchronous>, transform_indices = @transform_3, window_bounds = array<i64: 128, 128>}, {transform_indices = @transform_4, window_bounds = array<i64: 8, 128>}]} {
    %c0 = arith.constant 0 : index
    %c0_0 = arith.constant 0 : index
    %0 = vector.load %arg1[%c0, %c0_0] : memref<8x128xf32, #tpu.memory_space<vmem>>, vector<8x128xf32>
    %c0_1 = arith.constant 0 : index
    %c0_2 = arith.constant 0 : index
    %1 = vector.load %arg3[%c0_1, %c0_2] : memref<128x128xbf16, #tpu.memory_space<vmem>>, vector<128x128xbf16>
    %2 = arith.truncf %0 : vector<8x128xf32> to vector<8x128xbf16>
    %3 = arith.extf %2 : vector<8x128xbf16> to vector<8x128xf32>
    %4 = arith.subf %0, %3 : vector<8x128xf32>
    %5 = arith.truncf %4 : vector<8x128xf32> to vector<8x128xbf16>
    %cst = arith.constant dense<0.000000e+00> : vector<8x128xf32>
    %6 = tpu.matmul %2, %1, %cst {dimension_numbers = #tpu.dot_dimension_numbers<[1], [0], [0], [1], [0, 0, 1, 1], [], []>} : vector<8x128xbf16>, vector<128x128xbf16>, vector<8x128xf32> -> vector<8x128xf32>
    %cst_3 = arith.constant dense<0.000000e+00> : vector<8x128xf32>
    %7 = tpu.matmul %5, %1, %cst_3 {dimension_numbers = #tpu.dot_dimension_numbers<[1], [0], [0], [1], [0, 0, 1, 1], [], []>} : vector<8x128xbf16>, vector<128x128xbf16>, vector<8x128xf32> -> vector<8x128xf32>
    %8 = arith.addf %6, %7 : vector<8x128xf32>
    %9 = arith.mulf %0, %0 : vector<8x128xf32>
    %10 = arith.truncf %9 : vector<8x128xf32> to vector<8x128xbf16>
    %11 = arith.extf %10 : vector<8x128xbf16> to vector<8x128xf32>
    %12 = arith.subf %9, %11 : vector<8x128xf32>
    %13 = arith.truncf %12 : vector<8x128xf32> to vector<8x128xbf16>
    %cst_4 = arith.constant dense<0.000000e+00> : vector<8x128xf32>
    %14 = tpu.matmul %10, %1, %cst_4 {dimension_numbers = #tpu.dot_dimension_numbers<[1], [0], [0], [1], [0, 0, 1, 1], [], []>} : vector<8x128xbf16>, vector<128x128xbf16>, vector<8x128xf32> -> vector<8x128xf32>
    %cst_5 = arith.constant dense<0.000000e+00> : vector<8x128xf32>
    %15 = tpu.matmul %13, %1, %cst_5 {dimension_numbers = #tpu.dot_dimension_numbers<[1], [0], [0], [1], [0, 0, 1, 1], [], []>} : vector<8x128xbf16>, vector<128x128xbf16>, vector<8x128xf32> -> vector<8x128xf32>
    %16 = arith.addf %14, %15 : vector<8x128xf32>
    %cst_6 = arith.constant 3.125000e-02 : f32
    %17 = vector.broadcast %cst_6 : f32 to vector<8x128xf32>
    %18 = arith.mulf %8, %17 : vector<8x128xf32>
    %cst_7 = arith.constant 3.125000e-02 : f32
    %19 = vector.broadcast %cst_7 : f32 to vector<8x128xf32>
    %20 = arith.mulf %16, %19 : vector<8x128xf32>
    %21 = arith.mulf %18, %18 : vector<8x128xf32>
    %22 = arith.subf %20, %21 : vector<8x128xf32>
    %cst_8 = arith.constant 0.000000e+00 : f32
    %23 = vector.broadcast %cst_8 : f32 to vector<8x128xf32>
    %24 = arith.maximumf %22, %23 : vector<8x128xf32>
    %cst_9 = arith.constant 9.99999974E-6 : f32
    %25 = vector.broadcast %cst_9 : f32 to vector<8x128xf32>
    %26 = arith.addf %24, %25 : vector<8x128xf32>
    %27 = math.rsqrt %26 : vector<8x128xf32>
    %c0_10 = arith.constant 0 : index
    %c0_11 = arith.constant 0 : index
    %28 = vector.load %arg4[%c0_10, %c0_11] : memref<128x128xbf16, #tpu.memory_space<vmem>>, vector<128x128xbf16>
    %29 = arith.truncf %27 : vector<8x128xf32> to vector<8x128xbf16>
    %30 = arith.extf %29 : vector<8x128xbf16> to vector<8x128xf32>
    %31 = arith.subf %27, %30 : vector<8x128xf32>
    %32 = arith.truncf %31 : vector<8x128xf32> to vector<8x128xbf16>
    %cst_12 = arith.constant dense<0.000000e+00> : vector<8x128xf32>
    %33 = tpu.matmul %29, %28, %cst_12 {dimension_numbers = #tpu.dot_dimension_numbers<[1], [0], [0], [1], [0, 0, 1, 1], [], []>} : vector<8x128xbf16>, vector<128x128xbf16>, vector<8x128xf32> -> vector<8x128xf32>
    %cst_13 = arith.constant dense<0.000000e+00> : vector<8x128xf32>
    %34 = tpu.matmul %32, %28, %cst_13 {dimension_numbers = #tpu.dot_dimension_numbers<[1], [0], [0], [1], [0, 0, 1, 1], [], []>} : vector<8x128xbf16>, vector<128x128xbf16>, vector<8x128xf32> -> vector<8x128xf32>
    %35 = arith.addf %33, %34 : vector<8x128xf32>
    %36 = arith.mulf %0, %35 : vector<8x128xf32>
    %c0_14 = arith.constant 0 : index
    %c0_15 = arith.constant 0 : index
    %37 = vector.load %arg2[%c0_14, %c0_15] : memref<1x128xf32, #tpu.memory_space<vmem>>, vector<1x128xf32>
    %38 = vector.broadcast %37 : vector<1x128xf32> to vector<8x128xf32>
    %39 = arith.mulf %36, %38 : vector<8x128xf32>
    %c0_16 = arith.constant 0 : index
    %c0_17 = arith.constant 0 : index
    %40 = vector.load %arg5[%c0_16, %c0_17] : memref<8x128xf32, #tpu.memory_space<vmem>>, vector<8x128xf32>
    tpu.vector_store %arg5[%c0_16, %c0_17], %39 {strides = array<i32>} : memref<8x128xf32, #tpu.memory_space<vmem>>, vector<8x128xf32>,
    return
  }
  func.func @transform_0(%arg0: i32) -> (i32, i32) {
    %c0_i32 = arith.constant 0 : i32
    %c0_i32_0 = arith.constant 0 : i32
    return %arg0, %c0_i32 : i32, i32
  }
  func.func @transform_1(%arg0: i32) -> (i32, i32) {
    %c0_i32 = arith.constant 0 : i32
    %c0_i32_0 = arith.constant 0 : i32
    %c0_i32_1 = arith.constant 0 : i32
    return %c0_i32, %c0_i32_0 : i32, i32
  }
  func.func @transform_2(%arg0: i32) -> (i32, i32) {
    %c0_i32 = arith.constant 0 : i32
    %c0_i32_0 = arith.constant 0 : i32
    %c0_i32_1 = arith.constant 0 : i32
    return %c0_i32, %c0_i32_0 : i32, i32
  }
  func.func @transform_3(%arg0: i32) -> (i32, i32) {
    %c0_i32 = arith.constant 0 : i32
    %c0_i32_0 = arith.constant 0 : i32
    %c0_i32_1 = arith.constant 0 : i32
    return %c0_i32, %c0_i32_0 : i32, i32
  }
  func.func @transform_4(%arg0: i32) -> (i32, i32) {
    %c0_i32 = arith.constant 0 : i32
    %c0_i32_0 = arith.constant 0 : i32
    return %arg0, %c0_i32 : i32, i32
  }
}

</mosaic_0001>

<llo_original>
// kernel: tpu_custom_call.1
$region0: #{tpu_custom_call.1}
  #allocation0 [shape = 'u32[]', space=smem, size = 0x4, offset = 0x4, fixed_abs, tag = 'smem constant byte address 0x4 - core index']
  #allocation1 [shape = 'u32[144,128]{1,0:T(1,128)}', space=vmem, size = 0x12000, scoped, tag = 'internal scratch']
  %s0 = inlined_call_operand.hbm [shape: f32[32,128], index: 0, kind: input, shape index: {}]
  %s1 = inlined_call_operand.vmem [shape: f32[1,128], index: 1, kind: input, shape index: {}]
  %s2 = inlined_call_operand.hbm [shape: bf16[128,128], index: 2, kind: input, shape index: {}]
  %s3 = inlined_call_operand.hbm [shape: bf16[128,128], index: 3, kind: input, shape index: {}]
  %s4 = inlined_call_operand.hbm [shape: f32[32,128], index: 4, kind: output, shape index: {}]
  %s5 = sld [smem:[#allocation0]]
  $region61: #{tpu_custom_call.1} parent=0
    _
  %s7 = ssub.s32 1, %s5
  %s8 = scalar_select 0, %s7, %s5
  $region1: #{tpu_custom_call.1} parent=0
    #allocation2 [shape = 'u8[8192]{0}', space=vmem, size = 0x2000, scoped, tag = 'input window, operand 0']
    #allocation3 [shape = 's32[2]{0}', space=sflag, size = 0x8, scoped, tag = 'scoped memory for tpu_custom_call.1']
    #allocation4 [shape = 's32[2]{0}', space=sflag, size = 0x8, scoped, tag = 'scoped memory for tpu_custom_call.1']
    #allocation5 [shape = 'u8[32768]{0}', space=vmem, size = 0x8000, scoped, tag = 'input window, operand 2, single buffered']
    #allocation6 [shape = 's32[1]{0}', space=sflag, size = 0x4, scoped, tag = 'scoped memory for tpu_custom_call.1']
    #allocation7 [shape = 'u8[32768]{0}', space=vmem, size = 0x8000, scoped, tag = 'input window, operand 3, single buffered']
    #allocation8 [shape = 'u8[8192]{0}', space=vmem, size = 0x2000, scoped, tag = 'output window, operand 0']
    %9 = vsyncpa [#allocation3], 0
    %s10 = scalar_lea.sflag [#allocation3], 1
    %11 = vsyncpa %s10, 0
    %12 = vsyncpa [#allocation6], 0
    %13 = vsyncpa [#allocation4], 0
    %s14 = scalar_lea.sflag [#allocation4], 1
    %15 = vsyncpa %s14, 0
    loop: start=0, step=1, limit=6
    $region2: #{tpu_custom_call.1} parent=1 // loop_pre_header
      _
    $region3: #{tpu_custom_call.1} parent=1 // loop_header
      %s17 = sphi 0, %s21
      %p18 = scmp.ge.s32.totalorder %s17, 6
      %s27 = sphi 0, %s29
      %s30 = sphi 0, %s27
      %s31 = sphi 0, %s30
      %s47 = sphi 0, %s31
      %s51 = sphi 0, %s51
      %s53 = sphi 0, %s51
      %s54 = sphi 0, %s53
      %s68 = sphi 0, %s54
      %s72 = sphi 0, %s72
      %s74 = sphi 0, %s72
      %s75 = sphi 0, %s74
      %s89 = sphi 0, %s75
      %s93 = sphi 0, %s93
      %s95 = sphi 0, %s93
      %s96 = sphi 0, %s95
      %s110 = sphi 0, %s96
      %s116 = sphi 0, %s118
      %s119 = sphi 0, %s116
      %s120 = sphi 0, %s119
      %s136 = sphi 0, %s120
    $region4: #{tpu_custom_call.1} parent=1 // loop_header_branch
      %20 = sbr.rel (%p18) target = $region8
    $region5: #{tpu_custom_call.1} parent=1 // loop_body
      %s22 = ssub.s32 %s17, 1
      %s23 = ssub.s32 %s17, 2
      %s24 = sadd.s32 %s17, 1
      %s25 = ssub.s32 %s17, %s24
      %p26 = scmp.eq.s32.totalorder %s25, 0
      %s28 = sadd.s32 %s27, 1
      %s29 = scalar_select %p26, %s27, %s28
      %p32 = pneg %p26
      %p33 = scmp.eq.s32.totalorder %s17, 3
      %p34 = por %p32, %p33
      %p35 = scmp.ne.s32.totalorder %s27, %s30
      %p36 = scmp.eq.s32.totalorder %s17, 0
      %p37 = por %p35, %p36
      %p38 = scmp.ne.s32.totalorder %s27, %s30
      %p39 = scmp.eq.s32.totalorder %s22, 3
      %p40 = por %p38, %p39
      %p41 = scmp.ne.s32.totalorder %s30, %s31
      %p42 = scmp.eq.s32.totalorder %s22, 0
      %p43 = por %p41, %p42
      %p44 = scmp.ne.s32.totalorder %s30, %s31
      %p45 = scmp.eq.s32.totalorder %s23, 3
      %p46 = por %p44, %p45
      %p48 = scmp.ne.s32.totalorder %s31, %s47
      %p49 = scmp.eq.s32.totalorder %s23, 0
      %p50 = por %p48, %p49
      %s52 = sadd.s32 %s51, 1
      %p55 = scmp.eq.s32.totalorder %s17, 3
      %p56 = scmp.ne.s32.totalorder %s51, %s53
      %p57 = scmp.eq.s32.totalorder %s17, 0
      %p58 = por %p56, %p57
      %p59 = scmp.ne.s32.totalorder %s51, %s53
      %p60 = scmp.eq.s32.totalorder %s22, 3
      %p61 = por %p59, %p60
      %p62 = scmp.ne.s32.totalorder %s53, %s54
      %p63 = scmp.eq.s32.totalorder %s22, 0
      %p64 = por %p62, %p63
      %p65 = scmp.ne.s32.totalorder %s53, %s54
      %p66 = scmp.eq.s32.totalorder %s23, 3
      %p67 = por %p65, %p66
      %p69 = scmp.ne.s32.totalorder %s54, %s68
      %p70 = scmp.eq.s32.totalorder %s23, 0
      %p71 = por %p69, %p70
      %s73 = sadd.s32 %s72, 1
      %p76 = scmp.eq.s32.totalorder %s17, 3
      %p77 = scmp.ne.s32.totalorder %s72, %s74
      %p78 = scmp.eq.s32.totalorder %s17, 0
      %p79 = por %p77, %p78
      %p80 = scmp.ne.s32.totalorder %s72, %s74
      %p81 = scmp.eq.s32.totalorder %s22, 3
      %p82 = por %p80, %p81
      %p83 = scmp.ne.s32.totalorder %s74, %s75
      %p84 = scmp.eq.s32.totalorder %s22, 0
      %p85 = por %p83, %p84
      %p86 = scmp.ne.s32.totalorder %s74, %s75
      %p87 = scmp.eq.s32.totalorder %s23, 3
      %p88 = por %p86, %p87
      %p90 = scmp.ne.s32.totalorder %s75, %s89
      %p91 = scmp.eq.s32.totalorder %s23, 0
      %p92 = por %p90, %p91
      %s94 = sadd.s32 %s93, 1
      %p97 = scmp.eq.s32.totalorder %s17, 3
      %p98 = scmp.ne.s32.totalorder %s93, %s95
      %p99 = scmp.eq.s32.totalorder %s17, 0
      %p100 = por %p98, %p99
      %p101 = scmp.ne.s32.totalorder %s93, %s95
      %p102 = scmp.eq.s32.totalorder %s22, 3
      %p103 = por %p101, %p102
      %p104 = scmp.ne.s32.totalorder %s95, %s96
      %p105 = scmp.eq.s32.totalorder %s22, 0
      %p106 = por %p104, %p105
      %p107 = scmp.ne.s32.totalorder %s95, %s96
      %p108 = scmp.eq.s32.totalorder %s23, 3
      %p109 = por %p107, %p108
      %p111 = scmp.ne.s32.totalorder %s96, %s110
      %p112 = scmp.eq.s32.totalorder %s23, 0
      %p113 = por %p111, %p112
      %s114 = ssub.s32 %s17, %s24
      %p115 = scmp.eq.s32.totalorder %s114, 0
      %s117 = sadd.s32 %s116, 1
      %s118 = scalar_select %p115, %s116, %s117
      %p121 = pneg %p115
      %p122 = scmp.eq.s32.totalorder %s17, 3
      %p123 = por %p121, %p122
      %p124 = scmp.ne.s32.totalorder %s116, %s119
      %p125 = scmp.eq.s32.totalorder %s17, 0
      %p126 = por %p124, %p125
      %p127 = scmp.ne.s32.totalorder %s116, %s119
      %p128 = scmp.eq.s32.totalorder %s22, 3
      %p129 = por %p127, %p128
      %p130 = scmp.ne.s32.totalorder %s119, %s120
      %p131 = scmp.eq.s32.totalorder %s22, 0
      %p132 = por %p130, %p131
      %p133 = scmp.ne.s32.totalorder %s119, %s120
      %p134 = scmp.eq.s32.totalorder %s23, 3
      %p135 = por %p133, %p134
      %p137 = scmp.ne.s32.totalorder %s120, %s136
      %p138 = scmp.eq.s32.totalorder %s23, 0
      %p139 = por %p137, %p138
      %p140 = scmp.le.s32.totalorder 1, %s17
      %p141 = scmp.lt.s32.totalorder %s17, 5
      %p142 = pnand %p140, %p141
      %p143 = pneg %p142
      // Predicated region
      $region9: #{tpu_custom_call.1} parent=5 // pred_check
        _
      $region10: #{tpu_custom_call.1} parent=5 // pred_check_branch
        %145 = sbr.rel (%p142) target = $region12
      $region11: #{tpu_custom_call.1} parent=5 // pred_region
        %s146 = ssub.s32 %s17, 1
        // Predicated region
        $region13: #{tpu_custom_call.1} parent=11 // pred_check
          %p147 = pneg %p64
        $region14: #{tpu_custom_call.1} parent=11 // pred_check_branch
          %149 = sbr.rel (%p147) target = $region16
        $region15: #{tpu_custom_call.1} parent=11 // pred_region
          _
        $region16: #{tpu_custom_call.1} parent=11 // pred_fallthru
          _
        // Predicated region
        $region17: #{tpu_custom_call.1} parent=11 // pred_check
          %p150 = pneg %p85
        $region18: #{tpu_custom_call.1} parent=11 // pred_check_branch
          %152 = sbr.rel (%p150) target = $region20
        $region19: #{tpu_custom_call.1} parent=11 // pred_region
          %s154 = ssub.s32 1024, 1024
          %155 = vsyncadd [#allocation6], %s154
          %s156 = sshll.u32 [#allocation5], 4
          %s157 = int_to_ptr.vmem [resolvable:$true] %s156
          %162 = dma.hbm_to_vmem [thread:$0]  %s2, 1024, %s157, [#allocation6], 64, 64, 4
        $region20: #{tpu_custom_call.1} parent=11 // pred_fallthru
          _
        // Predicated region
        $region21: #{tpu_custom_call.1} parent=11 // pred_check
          %p163 = pneg %p106
        $region22: #{tpu_custom_call.1} parent=11 // pred_check_branch
          %165 = sbr.rel (%p163) target = $region24
        $region23: #{tpu_custom_call.1} parent=11 // pred_region
          %s167 = ssub.s32 1024, 1024
          %168 = vsyncadd [#allocation6], %s167
          %s169 = sshll.u32 [#allocation7], 4
          %s170 = int_to_ptr.vmem [resolvable:$true] %s169
          %175 = dma.hbm_to_vmem [thread:$0]  %s3, 1024, %s170, [#allocation6], 64, 64, 4
        $region24: #{tpu_custom_call.1} parent=11 // pred_fallthru
          _
      $region12: #{tpu_custom_call.1} parent=5 // pred_fallthru
        _
      %p176 = scmp.lt.s32.totalorder %s17, 4
      // Predicated region
      $region25: #{tpu_custom_call.1} parent=5 // pred_check
        %p177 = pneg %p176
      $region26: #{tpu_custom_call.1} parent=5 // pred_check_branch
        %179 = sbr.rel (%p177) target = $region28
      $region27: #{tpu_custom_call.1} parent=5 // pred_region
        // Predicated region
        $region29: #{tpu_custom_call.1} parent=27 // pred_check
          %p180 = pneg %p37
        $region30: #{tpu_custom_call.1} parent=27 // pred_check_branch
          %182 = sbr.rel (%p180) target = $region32
        $region31: #{tpu_custom_call.1} parent=27 // pred_region
          %s183 = sand.u32 %s27, 1
          %s184 = scalar_lea.sflag [#allocation3], %s183
          %s185 = sand.u32 %s27, 1
          %s186 = smul.addr %s185, 8
          %s187 = scalar_lea.vmem [#allocation2], %s186
          %s189 = ssub.s32 128, 128
          %190 = vsyncadd %s184, %s189
          %s191 = smul.addr %s17, 128
          %s192 = scalar_lea.hbm %s0, %s191
          %s194 = sshll.u32 %s187, 4
          %s195 = int_to_ptr.vmem [resolvable:$true] %s194
          %197 = dma.hbm_to_vmem [thread:$0]  %s192, 128, %s195, %s184
        $region32: #{tpu_custom_call.1} parent=27 // pred_fallthru
          _
      $region28: #{tpu_custom_call.1} parent=5 // pred_fallthru
        _
      %p198 = scmp.le.s32.totalorder 1, %s17
      %p199 = scmp.lt.s32.totalorder %s17, 5
      %p200 = pnand %p198, %p199
      %p201 = pneg %p200
      // Predicated region
      $region33: #{tpu_custom_call.1} parent=5 // pred_check
        _
      $region34: #{tpu_custom_call.1} parent=5 // pred_check_branch
        %203 = sbr.rel (%p200) target = $region36
      $region35: #{tpu_custom_call.1} parent=5 // pred_region
        %s204 = ssub.s32 %s17, 1
        %s205 = sand.u32 %s30, 1
        %s206 = scalar_lea.sflag [#allocation3], %s205
        %s207 = sand.u32 %s30, 1
        %s208 = smul.addr %s207, 8
        %s209 = scalar_lea.vmem [#allocation2], %s208
        // Predicated region
        $region37: #{tpu_custom_call.1} parent=35 // pred_check
          %p210 = pneg %p43
        $region38: #{tpu_custom_call.1} parent=35 // pred_check_branch
          %212 = sbr.rel (%p210) target = $region40
        $region39: #{tpu_custom_call.1} parent=35 // pred_region
          %213 = dma.done %s206, 128
        $region40: #{tpu_custom_call.1} parent=35 // pred_fallthru
          _
        // Predicated region
        $region41: #{tpu_custom_call.1} parent=35 // pred_check
          %p214 = pneg %p85
        $region42: #{tpu_custom_call.1} parent=35 // pred_check_branch
          %216 = sbr.rel (%p214) target = $region44
        $region43: #{tpu_custom_call.1} parent=35 // pred_region
          %217 = dma.done [#allocation6], 1024
        $region44: #{tpu_custom_call.1} parent=35 // pred_fallthru
          _
        // Predicated region
        $region45: #{tpu_custom_call.1} parent=35 // pred_check
          %p218 = pneg %p106
        $region46: #{tpu_custom_call.1} parent=35 // pred_check_branch
          %220 = sbr.rel (%p218) target = $region48
        $region47: #{tpu_custom_call.1} parent=35 // pred_region
          %221 = dma.done [#allocation6], 1024
        $region48: #{tpu_custom_call.1} parent=35 // pred_fallthru
          _
        %s222 = sand.u32 %s30, 1
        %s223 = scalar_lea.sflag [#allocation3], %s222
        %s224 = sand.u32 %s30, 1
        %s225 = smul.addr %s224, 8
        %s226 = scalar_lea.vmem [#allocation2], %s225
        %p227 = pneg %p43
        %p228 = pneg %p40
        %p229 = pneg %p64
        %p230 = pneg %p61
        %p231 = pneg %p85
        %p232 = pneg %p82
        %p233 = pneg %p106
        %p234 = pneg %p103
        %p235 = pneg %p132
        %p236 = pneg %p129
        %s237 = sand.u32 %s119, 1
        %s238 = scalar_lea.sflag [#allocation4], %s237
        %s239 = sand.u32 %s119, 1
        %s240 = smul.addr %s239, 8
        %s241 = scalar_lea.vmem [#allocation8], %s240
        %v243 = vld [vmem:[%s209] sm:$0xff]
        %v244 = vld [vmem:[#allocation5] sm:$0xf]
        %v245 = vld [vmem:[#allocation5 + $0x4] sm:$0xf]
        %v246 = vld [vmem:[#allocation5 + $0x8] sm:$0xf]
        %v247 = vld [vmem:[#allocation5 + $0xc] sm:$0xf]
        %v248 = vld [vmem:[#allocation5 + $0x10] sm:$0xf]
        %v249 = vld [vmem:[#allocation5 + $0x14] sm:$0xf]
        %v250 = vld [vmem:[#allocation5 + $0x18] sm:$0xf]
        %v251 = vld [vmem:[#allocation5 + $0x1c] sm:$0xf]
        %v252 = vld [vmem:[#allocation5 + $0x20] sm:$0xf]
        %v253 = vld [vmem:[#allocation5 + $0x24] sm:$0xf]
        %v254 = vld [vmem:[#allocation5 + $0x28] sm:$0xf]
        %v255 = vld [vmem:[#allocation5 + $0x2c] sm:$0xf]
        %v256 = vld [vmem:[#allocation5 + $0x30] sm:$0xf]
        %v257 = vld [vmem:[#allocation5 + $0x34] sm:$0xf]
        %v258 = vld [vmem:[#allocation5 + $0x38] sm:$0xf]
        %v259 = vld [vmem:[#allocation5 + $0x3c] sm:$0xf]
        %v260 = vpack.c.bf16 %v243, %v243
        %v261 = vunpack.c.l.bf16 %v260
        %v262 = vsub.f32 %v243, %v261
        %v263 = vpack.c.bf16 %v262, %v262
        %v280 = vunpack.c.l.b16 %v244
        %v281 = vunpack.c.l.b16 %v245
        %v282 = vunpack.c.l.b16 %v246
        %v283 = vunpack.c.l.b16 %v247
        %v284 = vunpack.c.l.b16 %v248
        %v285 = vunpack.c.l.b16 %v249
        %v286 = vunpack.c.l.b16 %v250
        %v287 = vunpack.c.l.b16 %v251
        %v288 = vunpack.c.l.b16 %v252
        %v289 = vunpack.c.l.b16 %v253
        %v290 = vunpack.c.l.b16 %v254
        %v291 = vunpack.c.l.b16 %v255
        %v292 = vunpack.c.l.b16 %v256
        %v293 = vunpack.c.l.b16 %v257
        %v294 = vunpack.c.l.b16 %v258
        %v295 = vunpack.c.l.b16 %v259
        %v296 = vpack.c.b16 %v281, %v280
        %v297 = vpack.c.b16 %v283, %v282
        %v298 = vpack.c.b16 %v285, %v284
        %v299 = vpack.c.b16 %v287, %v286
        %v300 = vpack.c.b16 %v289, %v288
        %v301 = vpack.c.b16 %v291, %v290
        %v302 = vpack.c.b16 %v293, %v292
        %v303 = vpack.c.b16 %v295, %v294
        %312 = vmatprep.subr.bf16.mxu0 0
        %313 = vmatpush1.bf16.msra.mxu0 %v296
        %314 = vmatprep.subr.bf16.mxu0 0
        %315 = vmatpush1.bf16.msra.mxu0 %v297
        %316 = vmatprep.subr.bf16.mxu0 0
        %317 = vmatpush1.bf16.msra.mxu0 %v298
        %318 = vmatprep.subr.bf16.mxu0 0
        %319 = vmatpush1.bf16.msra.mxu0 %v299
        %320 = vmatprep.subr.bf16.mxu0 0
        %321 = vmatpush1.bf16.msra.mxu0 %v300
        %322 = vmatprep.subr.bf16.mxu0 0
        %323 = vmatpush1.bf16.msra.mxu0 %v301
        %324 = vmatprep.subr.bf16.mxu0 0
        %325 = vmatpush1.bf16.msra.mxu0 %v302
        %326 = vmatprep.subr.bf16.mxu0 0
        %327 = vmatpush1.bf16.msra.mxu0 %v303
        %328 = vmatprep.subr.bf16.mxu0 0
        %329 = vmatpush1.bf16.msra.mxu0 0
        %330 = vmatprep.subr.bf16.mxu0 0
        %331 = vmatpush1.bf16.msra.mxu0 0
        %332 = vmatprep.subr.bf16.mxu0 0
        %333 = vmatpush1.bf16.msra.mxu0 0
        %334 = vmatprep.subr.bf16.mxu0 0
        %335 = vmatpush1.bf16.msra.mxu0 0
        %336 = vmatprep.subr.bf16.mxu0 0
        %337 = vmatpush1.bf16.msra.mxu0 0
        %338 = vmatprep.subr.bf16.mxu0 0
        %339 = vmatpush1.bf16.msra.mxu0 0
        %340 = vmatprep.subr.bf16.mxu0 0
        %341 = vmatpush1.bf16.msra.mxu0 0
        %342 = vmatprep.subr.bf16.mxu0 0
        %343 = vmatpush1.bf16.msra.mxu0 0
        %344 = vmatprep.mubr.bf16.mxu0 0
        %345 = vmatmul.mubr.bf16.gmra.mrb[0].mxu0 %v263
        %v346 = vpop.f32.mrb[0].mxu0
        %v347 = vadd.f32 0.0, %v346
        %v348 = vpop.f32.mrb[0].mxu0
        %v349 = vpop.f32.mrb[0].mxu0
        %v350 = vpop.f32.mrb[0].mxu0
        %351 = vdwg.mxu0
        %352 = vmatprep.subr.bf16.mxu0 0
        %353 = vmatpush1.bf16.msra.mxu0 %v296
        %354 = vmatprep.subr.bf16.mxu0 0
        %355 = vmatpush1.bf16.msra.mxu0 %v297
        %356 = vmatprep.subr.bf16.mxu0 0
        %357 = vmatpush1.bf16.msra.mxu0 %v298
        %358 = vmatprep.subr.bf16.mxu0 0
        %359 = vmatpush1.bf16.msra.mxu0 %v299
        %360 = vmatprep.subr.bf16.mxu0 0
        %361 = vmatpush1.bf16.msra.mxu0 %v300
        %362 = vmatprep.subr.bf16.mxu0 0
        %363 = vmatpush1.bf16.msra.mxu0 %v301
        %364 = vmatprep.subr.bf16.mxu0 0
        %365 = vmatpush1.bf16.msra.mxu0 %v302
        %366 = vmatprep.subr.bf16.mxu0 0
        %367 = vmatpush1.bf16.msra.mxu0 %v303
        %368 = vmatprep.subr.bf16.mxu0 0
        %369 = vmatpush1.bf16.msra.mxu0 0
        %370 = vmatprep.subr.bf16.mxu0 0
        %371 = vmatpush1.bf16.msra.mxu0 0
        %372 = vmatprep.subr.bf16.mxu0 0
        %373 = vmatpush1.bf16.msra.mxu0 0
        %374 = vmatprep.subr.bf16.mxu0 0
        %375 = vmatpush1.bf16.msra.mxu0 0
        %376 = vmatprep.subr.bf16.mxu0 0
        %377 = vmatpush1.bf16.msra.mxu0 0
        %378 = vmatprep.subr.bf16.mxu0 0
        %379 = vmatpush1.bf16.msra.mxu0 0
        %380 = vmatprep.subr.bf16.mxu0 0
        %381 = vmatpush1.bf16.msra.mxu0 0
        %382 = vmatprep.subr.bf16.mxu0 0
        %383 = vmatpush1.bf16.msra.mxu0 0
        %384 = vmatprep.mubr.bf16.mxu0 0
        %385 = vmatmul.mubr.bf16.gmra.mrb[0].mxu0 %v260
        %v386 = vpop.f32.mrb[0].mxu0
        %v387 = vadd.f32 %v347, %v386
        %v388 = vpop.f32.mrb[0].mxu0
        %v389 = vpop.f32.mrb[0].mxu0
        %v390 = vpop.f32.mrb[0].mxu0
        %391 = vdwg.mxu0
        %v392 = vmul.f32 %v243, %v243
        %v393 = vpack.c.bf16 %v392, %v392
        %v394 = vunpack.c.l.bf16 %v393
        %v395 = vsub.f32 %v392, %v394
        %v396 = vpack.c.bf16 %v395, %v395
        %397 = vmatprep.subr.bf16.mxu0 0
        %398 = vmatpush1.bf16.msra.mxu0 %v296
        %399 = vmatprep.subr.bf16.mxu0 0
        %400 = vmatpush1.bf16.msra.mxu0 %v297
        %401 = vmatprep.subr.bf16.mxu0 0
        %402 = vmatpush1.bf16.msra.mxu0 %v298
        %403 = vmatprep.subr.bf16.mxu0 0
        %404 = vmatpush1.bf16.msra.mxu0 %v299
        %405 = vmatprep.subr.bf16.mxu0 0
        %406 = vmatpush1.bf16.msra.mxu0 %v300
        %407 = vmatprep.subr.bf16.mxu0 0
        %408 = vmatpush1.bf16.msra.mxu0 %v301
        %409 = vmatprep.subr.bf16.mxu0 0
        %410 = vmatpush1.bf16.msra.mxu0 %v302
        %411 = vmatprep.subr.bf16.mxu0 0
        %412 = vmatpush1.bf16.msra.mxu0 %v303
        %413 = vmatprep.subr.bf16.mxu0 0
        %414 = vmatpush1.bf16.msra.mxu0 0
        %415 = vmatprep.subr.bf16.mxu0 0
        %416 = vmatpush1.bf16.msra.mxu0 0
        %417 = vmatprep.subr.bf16.mxu0 0
        %418 = vmatpush1.bf16.msra.mxu0 0
        %419 = vmatprep.subr.bf16.mxu0 0
        %420 = vmatpush1.bf16.msra.mxu0 0
        %421 = vmatprep.subr.bf16.mxu0 0
        %422 = vmatpush1.bf16.msra.mxu0 0
        %423 = vmatprep.subr.bf16.mxu0 0
        %424 = vmatpush1.bf16.msra.mxu0 0
        %425 = vmatprep.subr.bf16.mxu0 0
        %426 = vmatpush1.bf16.msra.mxu0 0
        %427 = vmatprep.subr.bf16.mxu0 0
        %428 = vmatpush1.bf16.msra.mxu0 0
        %429 = vmatprep.mubr.bf16.mxu0 0
        %430 = vmatmul.mubr.bf16.gmra.mrb[0].mxu0 %v396
        %v431 = vpop.f32.mrb[0].mxu0
        %v432 = vadd.f32 0.0, %v431
        %v433 = vpop.f32.mrb[0].mxu0
        %v434 = vpop.f32.mrb[0].mxu0
        %v435 = vpop.f32.mrb[0].mxu0
        %436 = vdwg.mxu0
        %437 = vmatprep.subr.bf16.mxu0 0
        %438 = vmatpush1.bf16.msra.mxu0 %v296
        %439 = vmatprep.subr.bf16.mxu0 0
        %440 = vmatpush1.bf16.msra.mxu0 %v297
        %441 = vmatprep.subr.bf16.mxu0 0
        %442 = vmatpush1.bf16.msra.mxu0 %v298
        %443 = vmatprep.subr.bf16.mxu0 0
        %444 = vmatpush1.bf16.msra.mxu0 %v299
        %445 = vmatprep.subr.bf16.mxu0 0
        %446 = vmatpush1.bf16.msra.mxu0 %v300
        %447 = vmatprep.subr.bf16.mxu0 0
        %448 = vmatpush1.bf16.msra.mxu0 %v301
        %449 = vmatprep.subr.bf16.mxu0 0
        %450 = vmatpush1.bf16.msra.mxu0 %v302
        %451 = vmatprep.subr.bf16.mxu0 0
        %452 = vmatpush1.bf16.msra.mxu0 %v303
        %453 = vmatprep.subr.bf16.mxu0 0
        %454 = vmatpush1.bf16.msra.mxu0 0
        %455 = vmatprep.subr.bf16.mxu0 0
        %456 = vmatpush1.bf16.msra.mxu0 0
        %457 = vmatprep.subr.bf16.mxu0 0
        %458 = vmatpush1.bf16.msra.mxu0 0
        %459 = vmatprep.subr.bf16.mxu0 0
        %460 = vmatpush1.bf16.msra.mxu0 0
        %461 = vmatprep.subr.bf16.mxu0 0
        %462 = vmatpush1.bf16.msra.mxu0 0
        %463 = vmatprep.subr.bf16.mxu0 0
        %464 = vmatpush1.bf16.msra.mxu0 0
        %465 = vmatprep.subr.bf16.mxu0 0
        %466 = vmatpush1.bf16.msra.mxu0 0
        %467 = vmatprep.subr.bf16.mxu0 0
        %468 = vmatpush1.bf16.msra.mxu0 0
        %469 = vmatprep.mubr.bf16.mxu0 0
        %470 = vmatmul.mubr.bf16.gmra.mrb[0].mxu0 %v393
        %v471 = vpop.f32.mrb[0].mxu0
        %v472 = vadd.f32 %v432, %v471
        %v473 = vpop.f32.mrb[0].mxu0
        %v474 = vpop.f32.mrb[0].mxu0
        %v475 = vpop.f32.mrb[0].mxu0
        %476 = vdwg.mxu0
        %v477 = vmul.f32 %v387, 0.03125
        %v478 = vmul.f32 %v472, 0.03125
        %v479 = vmul.f32 %v477, %v477
        %v480 = vsub.f32 %v478, %v479
        %v481 = vmax.f32 %v480, 0.0
        %v482 = vadd.f32 %v481, 1e-05
        %v483 = vrsqrt.pop %v482
        %v484 = vld [vmem:[#allocation7] sm:$0xf]
        %v485 = vld [vmem:[#allocation7 + $0x4] sm:$0xf]
        %v486 = vld [vmem:[#allocation7 + $0x8] sm:$0xf]
        %v487 = vld [vmem:[#allocation7 + $0xc] sm:$0xf]
        %v488 = vld [vmem:[#allocation7 + $0x10] sm:$0xf]
        %v489 = vld [vmem:[#allocation7 + $0x14] sm:$0xf]
        %v490 = vld [vmem:[#allocation7 + $0x18] sm:$0xf]
        %v491 = vld [vmem:[#allocation7 + $0x1c] sm:$0xf]
        %v492 = vld [vmem:[#allocation7 + $0x20] sm:$0xf]
        %v493 = vld [vmem:[#allocation7 + $0x24] sm:$0xf]
        %v494 = vld [vmem:[#allocation7 + $0x28] sm:$0xf]
        %v495 = vld [vmem:[#allocation7 + $0x2c] sm:$0xf]
        %v496 = vld [vmem:[#allocation7 + $0x30] sm:$0xf]
        %v497 = vld [vmem:[#allocation7 + $0x34] sm:$0xf]
        %v498 = vld [vmem:[#allocation7 + $0x38] sm:$0xf]
        %v499 = vld [vmem:[#allocation7 + $0x3c] sm:$0xf]
        %v500 = vpack.c.bf16 %v483, %v483
        %v501 = vunpack.c.l.bf16 %v500
        %v502 = vsub.f32 %v483, %v501
        %v503 = vpack.c.bf16 %v502, %v502
        %v520 = vunpack.c.l.b16 %v484
        %v521 = vunpack.c.l.b16 %v485
        %v522 = vunpack.c.l.b16 %v486
        %v523 = vunpack.c.l.b16 %v487
        %v524 = vunpack.c.l.b16 %v488
        %v525 = vunpack.c.l.b16 %v489
        %v526 = vunpack.c.l.b16 %v490
        %v527 = vunpack.c.l.b16 %v491
        %v528 = vunpack.c.l.b16 %v492
        %v529 = vunpack.c.l.b16 %v493
        %v530 = vunpack.c.l.b16 %v494
        %v531 = vunpack.c.l.b16 %v495
        %v532 = vunpack.c.l.b16 %v496
        %v533 = vunpack.c.l.b16 %v497
        %v534 = vunpack.c.l.b16 %v498
        %v535 = vunpack.c.l.b16 %v499
        %v536 = vpack.c.b16 %v521, %v520
        %v537 = vpack.c.b16 %v523, %v522
        %v538 = vpack.c.b16 %v525, %v524
        %v539 = vpack.c.b16 %v527, %v526
        %v540 = vpack.c.b16 %v529, %v528
        %v541 = vpack.c.b16 %v531, %v530
        %v542 = vpack.c.b16 %v533, %v532
        %v543 = vpack.c.b16 %v535, %v534
        %552 = vmatprep.subr.bf16.mxu0 0
        %553 = vmatpush1.bf16.msra.mxu0 %v536
        %554 = vmatprep.subr.bf16.mxu0 0
        %555 = vmatpush1.bf16.msra.mxu0 %v537
        %556 = vmatprep.subr.bf16.mxu0 0
        %557 = vmatpush1.bf16.msra.mxu0 %v538
        %558 = vmatprep.subr.bf16.mxu0 0
        %559 = vmatpush1.bf16.msra.mxu0 %v539
        %560 = vmatprep.subr.bf16.mxu0 0
        %561 = vmatpush1.bf16.msra.mxu0 %v540
        %562 = vmatprep.subr.bf16.mxu0 0
        %563 = vmatpush1.bf16.msra.mxu0 %v541
        %564 = vmatprep.subr.bf16.mxu0 0
        %565 = vmatpush1.bf16.msra.mxu0 %v542
        %566 = vmatprep.subr.bf16.mxu0 0
        %567 = vmatpush1.bf16.msra.mxu0 %v543
        %568 = vmatprep.subr.bf16.mxu0 0
        %569 = vmatpush1.bf16.msra.mxu0 0
        %570 = vmatprep.subr.bf16.mxu0 0
        %571 = vmatpush1.bf16.msra.mxu0 0
        %572 = vmatprep.subr.bf16.mxu0 0
        %573 = vmatpush1.bf16.msra.mxu0 0
        %574 = vmatprep.subr.bf16.mxu0 0
        %575 = vmatpush1.bf16.msra.mxu0 0
        %576 = vmatprep.subr.bf16.mxu0 0
        %577 = vmatpush1.bf16.msra.mxu0 0
        %578 = vmatprep.subr.bf16.mxu0 0
        %579 = vmatpush1.bf16.msra.mxu0 0
        %580 = vmatprep.subr.bf16.mxu0 0
        %581 = vmatpush1.bf16.msra.mxu0 0
        %582 = vmatprep.subr.bf16.mxu0 0
        %583 = vmatpush1.bf16.msra.mxu0 0
        %584 = vmatprep.mubr.bf16.mxu0 0
        %585 = vmatmul.mubr.bf16.gmra.mrb[0].mxu0 %v503
        %v586 = vpop.f32.mrb[0].mxu0
        %v587 = vadd.f32 0.0, %v586
        %v588 = vpop.f32.mrb[0].mxu0
        %v589 = vpop.f32.mrb[0].mxu0
        %v590 = vpop.f32.mrb[0].mxu0
        %591 = vdwg.mxu0
        %592 = vmatprep.subr.bf16.mxu0 0
        %593 = vmatpush1.bf16.msra.mxu0 %v536
        %594 = vmatprep.subr.bf16.mxu0 0
        %595 = vmatpush1.bf16.msra.mxu0 %v537
        %596 = vmatprep.subr.bf16.mxu0 0
        %597 = vmatpush1.bf16.msra.mxu0 %v538
        %598 = vmatprep.subr.bf16.mxu0 0
        %599 = vmatpush1.bf16.msra.mxu0 %v539
        %600 = vmatprep.subr.bf16.mxu0 0
        %601 = vmatpush1.bf16.msra.mxu0 %v540
        %602 = vmatprep.subr.bf16.mxu0 0
        %603 = vmatpush1.bf16.msra.mxu0 %v541
        %604 = vmatprep.subr.bf16.mxu0 0
        %605 = vmatpush1.bf16.msra.mxu0 %v542
        %606 = vmatprep.subr.bf16.mxu0 0
        %607 = vmatpush1.bf16.msra.mxu0 %v543
        %608 = vmatprep.subr.bf16.mxu0 0
        %609 = vmatpush1.bf16.msra.mxu0 0
        %610 = vmatprep.subr.bf16.mxu0 0
        %611 = vmatpush1.bf16.msra.mxu0 0
        %612 = vmatprep.subr.bf16.mxu0 0
        %613 = vmatpush1.bf16.msra.mxu0 0
        %614 = vmatprep.subr.bf16.mxu0 0
        %615 = vmatpush1.bf16.msra.mxu0 0
        %616 = vmatprep.subr.bf16.mxu0 0
        %617 = vmatpush1.bf16.msra.mxu0 0
        %618 = vmatprep.subr.bf16.mxu0 0
        %619 = vmatpush1.bf16.msra.mxu0 0
        %620 = vmatprep.subr.bf16.mxu0 0
        %621 = vmatpush1.bf16.msra.mxu0 0
        %622 = vmatprep.subr.bf16.mxu0 0
        %623 = vmatpush1.bf16.msra.mxu0 0
        %624 = vmatprep.mubr.bf16.mxu0 0
        %625 = vmatmul.mubr.bf16.gmra.mrb[0].mxu0 %v500
        %v626 = vpop.f32.mrb[0].mxu0
        %v627 = vadd.f32 %v587, %v626
        %v628 = vpop.f32.mrb[0].mxu0
        %v629 = vpop.f32.mrb[0].mxu0
        %v630 = vpop.f32.mrb[0].mxu0
        %631 = vdwg.mxu0
        %v632 = vmul.f32 %v243, %v627
        %v633 = vld [vmem:[%s1] sm:$0x1]
        %v635 = vlaneseq
        %v636 = vshrl.u32 %v635, 7
        %v637 = vsub.s32 0, %v636
        %v638 = vrot.slane %v633, %v637
        %v640 = vmul.f32 %v632, %v638
        %641 = vst [vmem:[%s241] sm:$0xff] %v640
        %s642 = sand.u32 %s119, 1
        %s643 = scalar_lea.sflag [#allocation4], %s642
        %s644 = sand.u32 %s119, 1
        %s645 = smul.addr %s644, 8
        %s646 = scalar_lea.vmem [#allocation8], %s645
        // Predicated region
        $region49: #{tpu_custom_call.1} parent=35 // pred_check
          %p647 = pneg %p129
        $region50: #{tpu_custom_call.1} parent=35 // pred_check_branch
          %649 = sbr.rel (%p647) target = $region52
        $region51: #{tpu_custom_call.1} parent=35 // pred_region
          %s651 = ssub.s32 128, 128
          %652 = vsyncadd %s643, %s651
          %s653 = smul.addr %s22, 128
          %s654 = scalar_lea.hbm %s4, %s653
          %s656 = sshll.u32 %s646, 4
          %s657 = int_to_ptr.vmem [resolvable:$true] %s656
          %659 = dma.vmem_to_hbm [thread:$0]  %s657, 128, %s654, %s643
        $region52: #{tpu_custom_call.1} parent=35 // pred_fallthru
          _
      $region36: #{tpu_custom_call.1} parent=5 // pred_fallthru
        _
      %p660 = scmp.le.s32.totalorder 2, %s17
      // Predicated region
      $region53: #{tpu_custom_call.1} parent=5 // pred_check
        %p661 = pneg %p660
      $region54: #{tpu_custom_call.1} parent=5 // pred_check_branch
        %663 = sbr.rel (%p661) target = $region56
      $region55: #{tpu_custom_call.1} parent=5 // pred_region
        %s664 = ssub.s32 %s17, 2
        // Predicated region
        $region57: #{tpu_custom_call.1} parent=55 // pred_check
          %p665 = pneg %p135
        $region58: #{tpu_custom_call.1} parent=55 // pred_check_branch
          %667 = sbr.rel (%p665) target = $region60
        $region59: #{tpu_custom_call.1} parent=55 // pred_region
          %s668 = sand.u32 %s120, 1
          %s669 = scalar_lea.sflag [#allocation4], %s668
          %s670 = sand.u32 %s120, 1
          %s671 = smul.addr %s670, 8
          %s672 = scalar_lea.vmem [#allocation8], %s671
          %673 = dma.done %s669, 128
        $region60: #{tpu_custom_call.1} parent=55 // pred_fallthru
          _
      $region56: #{tpu_custom_call.1} parent=5 // pred_fallthru
        _
    $region6: #{tpu_custom_call.1} parent=1 // loop_footer
      %s21 = sadd.s32 1, %s17
    $region7: #{tpu_custom_call.1} parent=1 // loop_footer_branch
      %16 = sbr.rel target = $region3
    $region8: #{tpu_custom_call.1} parent=1 // loop_exit
      _
    %674 = vsyncpa [#allocation3], 1
    %s675 = scalar_lea.sflag [#allocation3], 1
    %676 = vsyncpa %s675, 1
    %677 = vsyncpa [#allocation6], 1
    %678 = vsyncpa [#allocation4], 1
    %s679 = scalar_lea.sflag [#allocation4], 1
    %680 = vsyncpa %s679, 1

</llo_original>
